<compile_context>
chip_gen: v6e
topology: v6e:2x2x1
jax: 0.10.0
libtpu: 0.0.40
codegen_flags: <defaults>
</compile_context>

<pallas_src>
import jax
import jax.numpy as jnp
from jax import lax
from jax.experimental import pallas as pl
from jax.experimental.pallas import tpu as pltpu


def _round_up(x, m):
    return ((x + m - 1) // m) * m


# ----------------------------------------------------------------------------
# Kernel
# ----------------------------------------------------------------------------
def _patch_embed_kernel(patches_ref, w_ref, pos_ref, out_ref):
    # patches_ref: (TM, Kp) bf16, TM = Bt*R_pad; cls rows and pad rows are 0.
    # w_ref:       (Kp, D)  bf16, VMEM-resident across the grid.
    # pos_ref:     (R_pad, D) f32 fused cls/bias/positional table (resident).
    # out_ref:     (TM, D) output dtype.
    acc = jnp.dot(patches_ref[...], w_ref[...],
                  preferred_element_type=jnp.float32)          # MXU, f32 acc
    tm, d = out_ref.shape
    r_pad = pos_ref.shape[0]
    bt = tm // r_pad
    if bt == 1:
        out_ref[...] = (acc + pos_ref[...]).astype(out_ref.dtype)
    else:
        # R_pad % 8 == 0, so splitting the sublane dim into (bt, r_pad) is a
        # layout-clean reshape; the add broadcasts pos across the batch tile.
        acc = acc.reshape(bt, r_pad, d) + pos_ref[...][None, :, :]
        out_ref[...] = acc.reshape(tm, d).astype(out_ref.dtype)


# ----------------------------------------------------------------------------
# Tiling / VMEM budgeting helpers
# ----------------------------------------------------------------------------
def _vmem_cap_bytes():
    """Per-generation VMEM request cap (v5e/v6e: 128 MiB, v7x: 64 MiB)."""
    phys = 64 * 1024 * 1024                  # conservative (v7x) if query fails
    try:
        phys = int(getattr(pltpu.get_tpu_info(), "vmem_capacity_bytes", phys))
    except Exception:
        pass
    # Leave headroom for Mosaic-internal scratch / compiler temporaries.
    return min((phys * 3) // 4, 100 * 1024 * 1024)


def _block_bytes(tm, r_pad, kp, d, out_itemsize, resident_bufs):
    """Exact per-step VMEM working set for the chosen buffer counts."""
    return (2 * tm * kp * 2                   # patches: double-buffered bf16
            + resident_bufs * kp * d * 2      # weight (1 buf when Buffered(1))
            + resident_bufs * r_pad * d * 4   # fused f32 pos table
            + 2 * tm * d * out_itemsize)      # output: double-buffered


def _vmem_limit_bytes(tm, r_pad, kp, d, out_itemsize, resident_bufs, cap):
    need = _block_bytes(tm, r_pad, kp, d, out_itemsize, resident_bufs)
    need += 2 * 1024 * 1024                   # headroom
    return int(min(max(need, 32 * 1024 * 1024), cap))


def _choose_batch_tile(batch, r_pad, kp, d, out_itemsize, vmem_cap,
                       max_rows=8192):
    """Largest divisor Bt of batch whose block fits the VMEM budget, preferring
    >=2 grid steps so megacore (v7x: 2 TCs) has work to shard."""
    def fits(bt):
        tm = bt * r_pad
        return (tm <= max_rows and
                _block_bytes(tm, r_pad, kp, d, out_itemsize, 2) <= vmem_cap)
    cands = [bt for bt in range(1, batch + 1) if batch % bt == 0 and fits(bt)]
    if not cands:
        return 1
    pref = [bt for bt in cands if batch // bt >= 2]
    return max(pref) if pref else max(cands)


# ----------------------------------------------------------------------------
# Forward pass
# ----------------------------------------------------------------------------
def patch_embedding_forward(x, w_conv, b_conv, cls_token, pos_embedding,
                            patch_size, *, out_dtype=None):
    """ViT PatchEmbedding forward.  x: (B, C, H, W) NCHW.
    Returns (B, num_patch + 1, embed_dim) in out_dtype (default: x.dtype)."""
    B, C, H, W = x.shape
    P = patch_size
    Hp, Wp = H // P, W // P
    NP = Hp * Wp
    D = w_conv.shape[0]
    K = C * P * P
    R = NP + 1                                 # rows per image (row 0 = cls)
    out_dtype = x.dtype if out_dtype is None else jnp.dtype(out_dtype)

    # Pad rows-per-image to a bf16-sublane-friendly multiple of 16 and K to a
    # lane multiple of 128; padding rows/cols are zero (contribute exactly 0).
    R_pad = _round_up(R, 16)
    Kp = _round_up(K, 128)

    # --- patch extraction glue: flatten patches in (C, ph, pw) order to match
    # the PyTorch Conv2d weight layout (D, C, P, P).  transpose + convert + pad
    # are back-to-back so XLA can fuse them into one pass over x (and, under
    # jit, into the kernel's input DMA via allow_input_fusion).
    patches = x.reshape(B, C, Hp, P, Wp, P)
    patches = patches.transpose(0, 2, 4, 1, 3, 5).reshape(B, NP, K)
    patches = patches.astype(jnp.bfloat16)
    patches = jnp.pad(patches, ((0, 0), (1, R_pad - R), (0, Kp - K)))
    patches = patches.reshape(B * R_pad, Kp)                    # (B*R_pad, Kp)

    w_flat = w_conv.reshape(D, K).T.astype(jnp.bfloat16)        # (K, D)
    w_flat = jnp.pad(w_flat, ((0, Kp - K), (0, 0)))             # (Kp, D)

    # --- fuse cls token + conv bias into the positional table (f32):
    #     row 0      = pos[0]  + cls_token   (conv bias excluded -> matches module)
    #     rows 1..NP = pos[1:] + conv_bias
    #     pad rows   = 0
    pos = pos_embedding.reshape(R, D).astype(jnp.float32)
    cls = cls_token.reshape(1, D).astype(jnp.float32)
    bias = b_conv.reshape(1, D).astype(jnp.float32)
    pos_fused = jnp.concatenate([pos[0:1] + cls, pos[1:] + bias], axis=0)
    pos_fused = jnp.pad(pos_fused, ((0, R_pad - R), (0, 0)))    # (R_pad, D)

    vmem_cap = _vmem_cap_bytes()
    Bt = _choose_batch_tile(B, R_pad, Kp, D, out_dtype.itemsize, vmem_cap)
    TM = Bt * R_pad
    grid = (B // Bt,)

    cost = pl.CostEstimate(
        flops=2 * B * R_pad * Kp * D,
        transcendentals=0,
        bytes_accessed=(B * R_pad * Kp * 2 + Kp * D * 2 + R_pad * D * 4
                        + B * R_pad * D * out_dtype.itemsize))

    def build(optimized):
        resident_bufs = 1 if optimized else 2
        if optimized:
            w_spec = pl.BlockSpec((Kp, D), lambda i: (0, 0),
                                  pipeline_mode=pl.Buffered(1))
            pos_spec = pl.BlockSpec((R_pad, D), lambda i: (0, 0),
                                    pipeline_mode=pl.Buffered(1))
        else:
            w_spec = pl.BlockSpec((Kp, D), lambda i: (0, 0))
            pos_spec = pl.BlockSpec((R_pad, D), lambda i: (0, 0))
        cp_kwargs = dict(
            dimension_semantics=("parallel",),
            vmem_limit_bytes=_vmem_limit_bytes(
                TM, R_pad, Kp, D, out_dtype.itemsize, resident_bufs, vmem_cap),
        )
        if optimized:
            cp_kwargs["allow_input_fusion"] = [True, False, False]
        return pl.pallas_call(
            _patch_embed_kernel,
            out_shape=jax.ShapeDtypeStruct((B * R_pad, D), out_dtype),
            grid_spec=pltpu.PrefetchScalarGridSpec(
                num_scalar_prefetch=0,
                grid=grid,
                in_specs=[
                    pl.BlockSpec((TM, Kp), lambda i: (i, 0)),   # patch rows
                    w_spec,                                      # resident W
                    pos_spec,                                    # resident pos
                ],
                out_specs=pl.BlockSpec((TM, D), lambda i: (i, 0)),
            ),
            compiler_params=pltpu.CompilerParams(**cp_kwargs),
            cost_estimate=cost,
        )

    try:
        out_flat = build(True)(patches, w_flat, pos_fused)
        out_flat = jax.block_until_ready(out_flat)
    except Exception:
        # Robust fallback: default double-buffered specs, no input fusion.
        out_flat = build(False)(patches, w_flat, pos_fused)

    # Drop the zero padding rows (cheap slice; fuses into the consumer under jit).
    return out_flat.reshape(B, R_pad, D)[:, :R, :]


# ----------------------------------------------------------------------------
# References
# ----------------------------------------------------------------------------
def _reference_conv(x, w_conv, b_conv, cls_token, pos_embedding, patch_size):
    """Pure-JAX f32 reference using lax.conv (matches PyTorch Conv2d)."""
    B = x.shape[0]
    D = w_conv.shape[0]
    y = lax.conv_general_dilated(
        x, w_conv,
        window_strides=(patch_size, patch_size),
        padding="VALID",
        dimension_numbers=("NCHW", "OIHW", "NCHW"),
    ) + b_conv.reshape(1, D, 1, 1)
    y = y.reshape(B, D, -1).transpose(0, 2, 1)                  # (B, NP, D)
    cls = jnp.broadcast_to(cls_token.reshape(1, 1, D), (B, 1, D))
    return jnp.concatenate([cls, y], axis=1) + pos_embedding


def _reference_bf16(x, w_conv, b_conv, cls_token, pos_embedding, patch_size):
    """Reference using the same bf16 operands / f32 accumulate as the kernel."""
    B, C, H, W = x.shape
    P = patch_size
    Hp, Wp = H // P, W // P
    NP = Hp * Wp
    D = w_conv.shape[0]
    K = C * P * P
    patches = x.reshape(B, C, Hp, P, Wp, P).transpose(0, 2, 4, 1, 3, 5)
    patches = patches.reshape(B, NP, K).astype(jnp.bfloat16)
    w = w_conv.reshape(D, K).T.astype(jnp.bfloat16)
    emb = jnp.einsum("bnk,kd->bnd", patches, w,
                     preferred_element_type=jnp.float32)
    emb = emb + b_conv.reshape(1, 1, D)
    cls = jnp.broadcast_to(cls_token.reshape(1, 1, D), (B, 1, D))
    full = jnp.concatenate([cls, emb], axis=1) + pos_embedding.reshape(1, NP + 1, D)
    return full.astype(x.dtype)


if __name__ == "__main__":
    # Small, module-consistent shapes (embed dim a multiple of 128 so output
    # stores are lane-dense).
    B, C, H = 2, 4, 16
    PATCH = 8
    EMBED = 128
    NP = (H // PATCH) * (H // PATCH)

    key = jax.random.PRNGKey(0)
    k_x, k_w, k_b, k_cls, k_pos = jax.random.split(key, 5)

    x = jax.random.normal(k_x, (B, C, H, H), dtype=jnp.float32)
    w_conv = jax.random.normal(k_w, (EMBED, C, PATCH, PATCH),
                               dtype=jnp.float32) * 0.02
    b_conv = jax.random.normal(k_b, (EMBED,), dtype=jnp.float32) * 0.02
    cls_token = jax.random.normal(k_cls, (1, 1, EMBED), dtype=jnp.float32)
    pos_embedding = jax.random.normal(k_pos, (1, NP + 1, EMBED),
                                      dtype=jnp.float32)

    out = patch_embedding_forward(x, w_conv, b_conv, cls_token,
                                  pos_embedding, PATCH)
    out = jax.block_until_ready(out)
    assert out.shape == (B, NP + 1, EMBED)

    # Tight check vs a reference doing identical bf16 matmul / f32 epilogue.
    ref_matched = _reference_bf16(x, w_conv, b_conv, cls_token,
                                  pos_embedding, PATCH)
    assert jnp.allclose(out, ref_matched, atol=1e-4, rtol=1e-4)

    # Loose check vs the full-f32 conv reference (bf16 operand rounding).
    ref_f32 = _reference_conv(x, w_conv, b_conv, cls_token,
                              pos_embedding, PATCH)
    assert jnp.allclose(out, ref_f32, atol=2e-2, rtol=2e-2)

    print("KERNEL_OK")
</pallas_src>

<mosaic_0001>
module attributes {stable_mosaic.version = 11 : i64} {
  func.func @_patch_embed_kernel(%arg0: i32, %arg1: memref<16x256xbf16, #tpu.memory_space<vmem>>, %arg2: memref<256x128xbf16, #tpu.memory_space<vmem>>, %arg3: memref<16x128xf32, #tpu.memory_space<vmem>>, %arg4: memref<16x128xf32, #tpu.memory_space<vmem>>) attributes {dimension_semantics = [#tpu.dimension_semantics<parallel>], iteration_bounds = array<i64: 2>, scalar_prefetch = 0 : i64, scratch_operands = 0 : i64, tpu.core_type = #tpu.core_type<tc>, window_params = [{transform_indices = @transform_0, window_bounds = array<i64: 16, 256>}, {pipeline_mode = #tpu.pipeline_mode<synchronous>, transform_indices = @transform_1, window_bounds = array<i64: 256, 128>}, {pipeline_mode = #tpu.pipeline_mode<synchronous>, transform_indices = @transform_2, window_bounds = array<i64: 16, 128>}, {transform_indices = @transform_3, window_bounds = array<i64: 16, 128>}]} {
    %c0 = arith.constant 0 : index
    %c0_0 = arith.constant 0 : index
    %0 = vector.load %arg1[%c0, %c0_0] : memref<16x256xbf16, #tpu.memory_space<vmem>>, vector<16x256xbf16>
    %c0_1 = arith.constant 0 : index
    %c0_2 = arith.constant 0 : index
    %1 = vector.load %arg2[%c0_1, %c0_2] : memref<256x128xbf16, #tpu.memory_space<vmem>>, vector<256x128xbf16>
    %cst = arith.constant dense<0.000000e+00> : vector<16x128xf32>
    %2 = tpu.matmul %0, %1, %cst {dimension_numbers = #tpu.dot_dimension_numbers<[1], [0], [0], [1], [0, 0, 1, 1], [], []>} : vector<16x256xbf16>, vector<256x128xbf16>, vector<16x128xf32> -> vector<16x128xf32>
    %c0_3 = arith.constant 0 : index
    %c0_4 = arith.constant 0 : index
    %3 = vector.load %arg3[%c0_3, %c0_4] : memref<16x128xf32, #tpu.memory_space<vmem>>, vector<16x128xf32>
    %4 = arith.addf %2, %3 : vector<16x128xf32>
    %c0_5 = arith.constant 0 : index
    %c0_6 = arith.constant 0 : index
    %5 = vector.load %arg4[%c0_5, %c0_6] : memref<16x128xf32, #tpu.memory_space<vmem>>, vector<16x128xf32>
    tpu.vector_store %arg4[%c0_5, %c0_6], %4 {strides = array<i32>} : memref<16x128xf32, #tpu.memory_space<vmem>>, vector<16x128xf32>,
    return
  }
  func.func @transform_0(%arg0: i32) -> (i32, i32) {
    %c0_i32 = arith.constant 0 : i32
    %c0_i32_0 = arith.constant 0 : i32
    return %arg0, %c0_i32 : i32, i32
  }
  func.func @transform_1(%arg0: i32) -> (i32, i32) {
    %c0_i32 = arith.constant 0 : i32
    %c0_i32_0 = arith.constant 0 : i32
    %c0_i32_1 = arith.constant 0 : i32
    return %c0_i32, %c0_i32_0 : i32, i32
  }
  func.func @transform_2(%arg0: i32) -> (i32, i32) {
    %c0_i32 = arith.constant 0 : i32
    %c0_i32_0 = arith.constant 0 : i32
    %c0_i32_1 = arith.constant 0 : i32
    return %c0_i32, %c0_i32_0 : i32, i32
  }
  func.func @transform_3(%arg0: i32) -> (i32, i32) {
    %c0_i32 = arith.constant 0 : i32
    %c0_i32_0 = arith.constant 0 : i32
    return %arg0, %c0_i32 : i32, i32
  }
}

module attributes {stable_mosaic.version = 11 : i64} {
  func.func @_patch_embed_kernel(%arg0: i32, %arg1: memref<16x256xbf16, #tpu.memory_space<vmem>>, %arg2: memref<256x128xbf16, #tpu.memory_space<vmem>>, %arg3: memref<16x128xf32, #tpu.memory_space<vmem>>, %arg4: memref<16x128xf32, #tpu.memory_space<vmem>>) attributes {dimension_semantics = [#tpu.dimension_semantics<parallel>], iteration_bounds = array<i64: 2>, scalar_prefetch = 0 : i64, scratch_operands = 0 : i64, tpu.core_type = #tpu.core_type<tc>, window_params = [{transform_indices = @transform_0, window_bounds = array<i64: 16, 256>}, {pipeline_mode = #tpu.pipeline_mode<synchronous>, transform_indices = @transform_1, window_bounds = array<i64: 256, 128>}, {pipeline_mode = #tpu.pipeline_mode<synchronous>, transform_indices = @transform_2, window_bounds = array<i64: 16, 128>}, {transform_indices = @transform_3, window_bounds = array<i64: 16, 128>}]} {
    %c0 = arith.constant 0 : index
    %c0_0 = arith.constant 0 : index
    %0 = vector.load %arg1[%c0, %c0_0] : memref<16x256xbf16, #tpu.memory_space<vmem>>, vector<16x256xbf16>
    %c0_1 = arith.constant 0 : index
    %c0_2 = arith.constant 0 : index
    %1 = vector.load %arg2[%c0_1, %c0_2] : memref<256x128xbf16, #tpu.memory_space<vmem>>, vector<256x128xbf16>
    %cst = arith.constant dense<0.000000e+00> : vector<16x128xf32>
    %2 = tpu.matmul %0, %1, %cst {dimension_numbers = #tpu.dot_dimension_numbers<[1], [0], [0], [1], [0, 0, 1, 1], [], []>} : vector<16x256xbf16>, vector<256x128xbf16>, vector<16x128xf32> -> vector<16x128xf32>
    %c0_3 = arith.constant 0 : index
    %c0_4 = arith.constant 0 : index
    %3 = vector.load %arg3[%c0_3, %c0_4] : memref<16x128xf32, #tpu.memory_space<vmem>>, vector<16x128xf32>
    %4 = arith.addf %2, %3 : vector<16x128xf32>
    %c0_5 = arith.constant 0 : index
    %c0_6 = arith.constant 0 : index
    %5 = vector.load %arg4[%c0_5, %c0_6] : memref<16x128xf32, #tpu.memory_space<vmem>>, vector<16x128xf32>
    tpu.vector_store %arg4[%c0_5, %c0_6], %4 {strides = array<i32>} : memref<16x128xf32, #tpu.memory_space<vmem>>, vector<16x128xf32>,
    return
  }
  func.func @transform_0(%arg0: i32) -> (i32, i32) {
    %c0_i32 = arith.constant 0 : i32
    %c0_i32_0 = arith.constant 0 : i32
    return %arg0, %c0_i32 : i32, i32
  }
  func.func @transform_1(%arg0: i32) -> (i32, i32) {
    %c0_i32 = arith.constant 0 : i32
    %c0_i32_0 = arith.constant 0 : i32
    %c0_i32_1 = arith.constant 0 : i32
    return %c0_i32, %c0_i32_0 : i32, i32
  }
  func.func @transform_2(%arg0: i32) -> (i32, i32) {
    %c0_i32 = arith.constant 0 : i32
    %c0_i32_0 = arith.constant 0 : i32
    %c0_i32_1 = arith.constant 0 : i32
    return %c0_i32, %c0_i32_0 : i32, i32
  }
  func.func @transform_3(%arg0: i32) -> (i32, i32) {
    %c0_i32 = arith.constant 0 : i32
    %c0_i32_0 = arith.constant 0 : i32
    return %arg0, %c0_i32 : i32, i32
  }
}

</mosaic_0001>

<llo_original>
// kernel: tpu_custom_call.1
$region0: #{tpu_custom_call.1}
  #allocation0 [shape = 'u32[]', space=smem, size = 0x4, offset = 0x4, fixed_abs, tag = 'smem constant byte address 0x4 - core index']
  #allocation1 [shape = 'u32[144,128]{1,0:T(1,128)}', space=vmem, size = 0x12000, scoped, tag = 'internal scratch']
  %s0 = inlined_call_operand.hbm [shape: bf16[32,256], index: 0, kind: input, shape index: {}]
  %s1 = inlined_call_operand.hbm [shape: bf16[256,128], index: 1, kind: input, shape index: {}]
  %s2 = inlined_call_operand.hbm [shape: f32[16,128], index: 2, kind: input, shape index: {}]
  %s3 = inlined_call_operand.hbm [shape: f32[32,128], index: 3, kind: output, shape index: {}]
  %s4 = sld [smem:[#allocation0]]
  $region57: #{tpu_custom_call.1} parent=0
    _
  %s6 = ssub.s32 1, %s4
  %s7 = scalar_select 0, %s6, %s4
  $region1: #{tpu_custom_call.1} parent=0
    #allocation2 [shape = 'u8[16384]{0}', space=vmem, size = 0x4000, scoped, tag = 'input window, operand 0']
    #allocation3 [shape = 's32[2]{0}', space=sflag, size = 0x8, scoped, tag = 'scoped memory for tpu_custom_call.1']
    #allocation4 [shape = 's32[2]{0}', space=sflag, size = 0x8, scoped, tag = 'scoped memory for tpu_custom_call.1']
    #allocation5 [shape = 'u8[65536]{0}', space=vmem, size = 0x10000, scoped, tag = 'input window, operand 1, single buffered']
    #allocation6 [shape = 's32[1]{0}', space=sflag, size = 0x4, scoped, tag = 'scoped memory for tpu_custom_call.1']
    #allocation7 [shape = 'u8[8192]{0}', space=vmem, size = 0x2000, scoped, tag = 'input window, operand 2, single buffered']
    #allocation8 [shape = 'u8[16384]{0}', space=vmem, size = 0x4000, scoped, tag = 'output window, operand 0']
    %8 = vsyncpa [#allocation3], 0
    %s9 = scalar_lea.sflag [#allocation3], 1
    %10 = vsyncpa %s9, 0
    %11 = vsyncpa [#allocation6], 0
    %12 = vsyncpa [#allocation4], 0
    %s13 = scalar_lea.sflag [#allocation4], 1
    %14 = vsyncpa %s13, 0
    loop: start=0, step=1, limit=4
    $region2: #{tpu_custom_call.1} parent=1 // loop_pre_header
      _
    $region3: #{tpu_custom_call.1} parent=1 // loop_header
      %s16 = sphi 0, %s20
      %p17 = scmp.ge.s32.totalorder %s16, 4
      %s26 = sphi 0, %s28
      %s29 = sphi 0, %s26
      %s30 = sphi 0, %s29
      %s46 = sphi 0, %s30
      %s50 = sphi 0, %s50
      %s52 = sphi 0, %s50
      %s53 = sphi 0, %s52
      %s67 = sphi 0, %s53
      %s71 = sphi 0, %s71
      %s73 = sphi 0, %s71
      %s74 = sphi 0, %s73
      %s88 = sphi 0, %s74
      %s94 = sphi 0, %s96
      %s97 = sphi 0, %s94
      %s98 = sphi 0, %s97
      %s114 = sphi 0, %s98
    $region4: #{tpu_custom_call.1} parent=1 // loop_header_branch
      %19 = sbr.rel (%p17) target = $region8
    $region5: #{tpu_custom_call.1} parent=1 // loop_body
      %s21 = ssub.s32 %s16, 1
      %s22 = ssub.s32 %s16, 2
      %s23 = sadd.s32 %s16, 1
      %s24 = ssub.s32 %s16, %s23
      %p25 = scmp.eq.s32.totalorder %s24, 0
      %s27 = sadd.s32 %s26, 1
      %s28 = scalar_select %p25, %s26, %s27
      %p31 = pneg %p25
      %p32 = scmp.eq.s32.totalorder %s16, 1
      %p33 = por %p31, %p32
      %p34 = scmp.ne.s32.totalorder %s26, %s29
      %p35 = scmp.eq.s32.totalorder %s16, 0
      %p36 = por %p34, %p35
      %p37 = scmp.ne.s32.totalorder %s26, %s29
      %p38 = scmp.eq.s32.totalorder %s21, 1
      %p39 = por %p37, %p38
      %p40 = scmp.ne.s32.totalorder %s29, %s30
      %p41 = scmp.eq.s32.totalorder %s21, 0
      %p42 = por %p40, %p41
      %p43 = scmp.ne.s32.totalorder %s29, %s30
      %p44 = scmp.eq.s32.totalorder %s22, 1
      %p45 = por %p43, %p44
      %p47 = scmp.ne.s32.totalorder %s30, %s46
      %p48 = scmp.eq.s32.totalorder %s22, 0
      %p49 = por %p47, %p48
      %s51 = sadd.s32 %s50, 1
      %p54 = scmp.eq.s32.totalorder %s16, 1
      %p55 = scmp.ne.s32.totalorder %s50, %s52
      %p56 = scmp.eq.s32.totalorder %s16, 0
      %p57 = por %p55, %p56
      %p58 = scmp.ne.s32.totalorder %s50, %s52
      %p59 = scmp.eq.s32.totalorder %s21, 1
      %p60 = por %p58, %p59
      %p61 = scmp.ne.s32.totalorder %s52, %s53
      %p62 = scmp.eq.s32.totalorder %s21, 0
      %p63 = por %p61, %p62
      %p64 = scmp.ne.s32.totalorder %s52, %s53
      %p65 = scmp.eq.s32.totalorder %s22, 1
      %p66 = por %p64, %p65
      %p68 = scmp.ne.s32.totalorder %s53, %s67
      %p69 = scmp.eq.s32.totalorder %s22, 0
      %p70 = por %p68, %p69
      %s72 = sadd.s32 %s71, 1
      %p75 = scmp.eq.s32.totalorder %s16, 1
      %p76 = scmp.ne.s32.totalorder %s71, %s73
      %p77 = scmp.eq.s32.totalorder %s16, 0
      %p78 = por %p76, %p77
      %p79 = scmp.ne.s32.totalorder %s71, %s73
      %p80 = scmp.eq.s32.totalorder %s21, 1
      %p81 = por %p79, %p80
      %p82 = scmp.ne.s32.totalorder %s73, %s74
      %p83 = scmp.eq.s32.totalorder %s21, 0
      %p84 = por %p82, %p83
      %p85 = scmp.ne.s32.totalorder %s73, %s74
      %p86 = scmp.eq.s32.totalorder %s22, 1
      %p87 = por %p85, %p86
      %p89 = scmp.ne.s32.totalorder %s74, %s88
      %p90 = scmp.eq.s32.totalorder %s22, 0
      %p91 = por %p89, %p90
      %s92 = ssub.s32 %s16, %s23
      %p93 = scmp.eq.s32.totalorder %s92, 0
      %s95 = sadd.s32 %s94, 1
      %s96 = scalar_select %p93, %s94, %s95
      %p99 = pneg %p93
      %p100 = scmp.eq.s32.totalorder %s16, 1
      %p101 = por %p99, %p100
      %p102 = scmp.ne.s32.totalorder %s94, %s97
      %p103 = scmp.eq.s32.totalorder %s16, 0
      %p104 = por %p102, %p103
      %p105 = scmp.ne.s32.totalorder %s94, %s97
      %p106 = scmp.eq.s32.totalorder %s21, 1
      %p107 = por %p105, %p106
      %p108 = scmp.ne.s32.totalorder %s97, %s98
      %p109 = scmp.eq.s32.totalorder %s21, 0
      %p110 = por %p108, %p109
      %p111 = scmp.ne.s32.totalorder %s97, %s98
      %p112 = scmp.eq.s32.totalorder %s22, 1
      %p113 = por %p111, %p112
      %p115 = scmp.ne.s32.totalorder %s98, %s114
      %p116 = scmp.eq.s32.totalorder %s22, 0
      %p117 = por %p115, %p116
      %p118 = scmp.le.s32.totalorder 1, %s16
      %p119 = scmp.lt.s32.totalorder %s16, 3
      %p120 = pnand %p118, %p119
      %p121 = pneg %p120
      // Predicated region
      $region9: #{tpu_custom_call.1} parent=5 // pred_check
        _
      $region10: #{tpu_custom_call.1} parent=5 // pred_check_branch
        %123 = sbr.rel (%p120) target = $region12
      $region11: #{tpu_custom_call.1} parent=5 // pred_region
        %s124 = ssub.s32 %s16, 1
        // Predicated region
        $region13: #{tpu_custom_call.1} parent=11 // pred_check
          %p125 = pneg %p63
        $region14: #{tpu_custom_call.1} parent=11 // pred_check_branch
          %127 = sbr.rel (%p125) target = $region16
        $region15: #{tpu_custom_call.1} parent=11 // pred_region
          %s129 = ssub.s32 2048, 2048
          %130 = vsyncadd [#allocation6], %s129
          %s131 = sshll.u32 [#allocation5], 4
          %s132 = int_to_ptr.vmem [resolvable:$true] %s131
          %137 = dma.hbm_to_vmem [thread:$0]  %s1, 2048, %s132, [#allocation6], 64, 64, 4
        $region16: #{tpu_custom_call.1} parent=11 // pred_fallthru
          _
        // Predicated region
        $region17: #{tpu_custom_call.1} parent=11 // pred_check
          %p138 = pneg %p84
        $region18: #{tpu_custom_call.1} parent=11 // pred_check_branch
          %140 = sbr.rel (%p138) target = $region20
        $region19: #{tpu_custom_call.1} parent=11 // pred_region
          %s142 = ssub.s32 256, 256
          %143 = vsyncadd [#allocation6], %s142
          %s144 = sshll.u32 [#allocation7], 4
          %s145 = int_to_ptr.vmem [resolvable:$true] %s144
          %150 = dma.hbm_to_vmem [thread:$0]  %s2, 256, %s145, [#allocation6], 128, 128, 8
        $region20: #{tpu_custom_call.1} parent=11 // pred_fallthru
          _
      $region12: #{tpu_custom_call.1} parent=5 // pred_fallthru
        _
      %p151 = scmp.lt.s32.totalorder %s16, 2
      // Predicated region
      $region21: #{tpu_custom_call.1} parent=5 // pred_check
        %p152 = pneg %p151
      $region22: #{tpu_custom_call.1} parent=5 // pred_check_branch
        %154 = sbr.rel (%p152) target = $region24
      $region23: #{tpu_custom_call.1} parent=5 // pred_region
        // Predicated region
        $region25: #{tpu_custom_call.1} parent=23 // pred_check
          %p155 = pneg %p36
        $region26: #{tpu_custom_call.1} parent=23 // pred_check_branch
          %157 = sbr.rel (%p155) target = $region28
        $region27: #{tpu_custom_call.1} parent=23 // pred_region
          %s158 = sand.u32 %s26, 1
          %s159 = scalar_lea.sflag [#allocation3], %s158
          %s160 = sand.u32 %s26, 1
          %s161 = smul.addr %s160, 16
          %s162 = scalar_lea.vmem [#allocation2], %s161
          %s163 = smul.u32 2, %s16
          %s165 = ssub.s32 256, 256
          %166 = vsyncadd %s159, %s165
          %s167 = smul.addr %s163, 2
          %s168 = smul.addr %s167, 64
          %s169 = scalar_lea.hbm %s0, %s168
          %s170 = sshll.u32 %s162, 4
          %s171 = int_to_ptr.vmem [resolvable:$true] %s170
          %176 = dma.hbm_to_vmem [thread:$0]  %s169, 256, %s171, %s159, 128, 128, 8
        $region28: #{tpu_custom_call.1} parent=23 // pred_fallthru
          _
      $region24: #{tpu_custom_call.1} parent=5 // pred_fallthru
        _
      %p177 = scmp.le.s32.totalorder 1, %s16
      %p178 = scmp.lt.s32.totalorder %s16, 3
      %p179 = pnand %p177, %p178
      %p180 = pneg %p179
      // Predicated region
      $region29: #{tpu_custom_call.1} parent=5 // pred_check
        _
      $region30: #{tpu_custom_call.1} parent=5 // pred_check_branch
        %182 = sbr.rel (%p179) target = $region32
      $region31: #{tpu_custom_call.1} parent=5 // pred_region
        %s183 = ssub.s32 %s16, 1
        %s184 = sand.u32 %s29, 1
        %s185 = scalar_lea.sflag [#allocation3], %s184
        %s186 = sand.u32 %s29, 1
        %s187 = smul.addr %s186, 16
        %s188 = scalar_lea.vmem [#allocation2], %s187
        // Predicated region
        $region33: #{tpu_custom_call.1} parent=31 // pred_check
          %p189 = pneg %p42
        $region34: #{tpu_custom_call.1} parent=31 // pred_check_branch
          %191 = sbr.rel (%p189) target = $region36
        $region35: #{tpu_custom_call.1} parent=31 // pred_region
          %192 = dma.done %s185, 256
        $region36: #{tpu_custom_call.1} parent=31 // pred_fallthru
          _
        // Predicated region
        $region37: #{tpu_custom_call.1} parent=31 // pred_check
          %p193 = pneg %p63
        $region38: #{tpu_custom_call.1} parent=31 // pred_check_branch
          %195 = sbr.rel (%p193) target = $region40
        $region39: #{tpu_custom_call.1} parent=31 // pred_region
          %196 = dma.done [#allocation6], 2048
        $region40: #{tpu_custom_call.1} parent=31 // pred_fallthru
          _
        // Predicated region
        $region41: #{tpu_custom_call.1} parent=31 // pred_check
          %p197 = pneg %p84
        $region42: #{tpu_custom_call.1} parent=31 // pred_check_branch
          %199 = sbr.rel (%p197) target = $region44
        $region43: #{tpu_custom_call.1} parent=31 // pred_region
          %200 = dma.done [#allocation6], 256
        $region44: #{tpu_custom_call.1} parent=31 // pred_fallthru
          _
        %s201 = sand.u32 %s29, 1
        %s202 = scalar_lea.sflag [#allocation3], %s201
        %s203 = sand.u32 %s29, 1
        %s204 = smul.addr %s203, 16
        %s205 = scalar_lea.vmem [#allocation2], %s204
        %p206 = pneg %p42
        %p207 = pneg %p39
        %p208 = pneg %p63
        %p209 = pneg %p60
        %p210 = pneg %p84
        %p211 = pneg %p81
        %p212 = pneg %p110
        %p213 = pneg %p107
        %s214 = sand.u32 %s97, 1
        %s215 = scalar_lea.sflag [#allocation4], %s214
        %s216 = sand.u32 %s97, 1
        %s217 = smul.addr %s216, 16
        %s218 = scalar_lea.vmem [#allocation8], %s217
        %s219 = smul.u32 2, %s21
        %s220 = smul.u32 2, %s21
        %v222 = vld [vmem:[%s188] sm:$0xff]
        %v223 = vld [vmem:[%s188 + $0x8] sm:$0xff]
        %v224 = vld [vmem:[#allocation5] sm:$0xf]
        %v225 = vld [vmem:[#allocation5 + $0x4] sm:$0xf]
        %v226 = vld [vmem:[#allocation5 + $0x8] sm:$0xf]
        %v227 = vld [vmem:[#allocation5 + $0xc] sm:$0xf]
        %v228 = vld [vmem:[#allocation5 + $0x10] sm:$0xf]
        %v229 = vld [vmem:[#allocation5 + $0x14] sm:$0xf]
        %v230 = vld [vmem:[#allocation5 + $0x18] sm:$0xf]
        %v231 = vld [vmem:[#allocation5 + $0x1c] sm:$0xf]
        %v232 = vld [vmem:[#allocation5 + $0x20] sm:$0xf]
        %v233 = vld [vmem:[#allocation5 + $0x24] sm:$0xf]
        %v234 = vld [vmem:[#allocation5 + $0x28] sm:$0xf]
        %v235 = vld [vmem:[#allocation5 + $0x2c] sm:$0xf]
        %v236 = vld [vmem:[#allocation5 + $0x30] sm:$0xf]
        %v237 = vld [vmem:[#allocation5 + $0x34] sm:$0xf]
        %v238 = vld [vmem:[#allocation5 + $0x38] sm:$0xf]
        %v239 = vld [vmem:[#allocation5 + $0x3c] sm:$0xf]
        %v240 = vld [vmem:[#allocation5 + $0x40] sm:$0xf]
        %v241 = vld [vmem:[#allocation5 + $0x44] sm:$0xf]
        %v242 = vld [vmem:[#allocation5 + $0x48] sm:$0xf]
        %v243 = vld [vmem:[#allocation5 + $0x4c] sm:$0xf]
        %v244 = vld [vmem:[#allocation5 + $0x50] sm:$0xf]
        %v245 = vld [vmem:[#allocation5 + $0x54] sm:$0xf]
        %v246 = vld [vmem:[#allocation5 + $0x58] sm:$0xf]
        %v247 = vld [vmem:[#allocation5 + $0x5c] sm:$0xf]
        %v248 = vld [vmem:[#allocation5 + $0x60] sm:$0xf]
        %v249 = vld [vmem:[#allocation5 + $0x64] sm:$0xf]
        %v250 = vld [vmem:[#allocation5 + $0x68] sm:$0xf]
        %v251 = vld [vmem:[#allocation5 + $0x6c] sm:$0xf]
        %v252 = vld [vmem:[#allocation5 + $0x70] sm:$0xf]
        %v253 = vld [vmem:[#allocation5 + $0x74] sm:$0xf]
        %v254 = vld [vmem:[#allocation5 + $0x78] sm:$0xf]
        %v255 = vld [vmem:[#allocation5 + $0x7c] sm:$0xf]
        %v256 = vld [vmem:[#allocation7] sm:$0xff]
        %v257 = vld [vmem:[#allocation7 + $0x8] sm:$0xff]
        %v260 = vunpack.c.l.b16 %v222
        %v261 = vunpack.c.h.b16 %v222
        %v262 = vunpack.c.l.b16 %v223
        %v263 = vunpack.c.h.b16 %v223
        %v264 = vpack.c.b16 %v262, %v260
        %v265 = vpack.c.b16 %v263, %v261
        %v300 = vunpack.c.l.b16 %v224
        %v301 = vunpack.c.l.b16 %v225
        %v302 = vunpack.c.l.b16 %v226
        %v303 = vunpack.c.l.b16 %v227
        %v304 = vunpack.c.l.b16 %v228
        %v305 = vunpack.c.l.b16 %v229
        %v306 = vunpack.c.l.b16 %v230
        %v307 = vunpack.c.l.b16 %v231
        %v308 = vunpack.c.l.b16 %v232
        %v309 = vunpack.c.l.b16 %v233
        %v310 = vunpack.c.l.b16 %v234
        %v311 = vunpack.c.l.b16 %v235
        %v312 = vunpack.c.l.b16 %v236
        %v313 = vunpack.c.l.b16 %v237
        %v314 = vunpack.c.l.b16 %v238
        %v315 = vunpack.c.l.b16 %v239
        %v316 = vunpack.c.l.b16 %v240
        %v317 = vunpack.c.l.b16 %v241
        %v318 = vunpack.c.l.b16 %v242
        %v319 = vunpack.c.l.b16 %v243
        %v320 = vunpack.c.l.b16 %v244
        %v321 = vunpack.c.l.b16 %v245
        %v322 = vunpack.c.l.b16 %v246
        %v323 = vunpack.c.l.b16 %v247
        %v324 = vunpack.c.l.b16 %v248
        %v325 = vunpack.c.l.b16 %v249
        %v326 = vunpack.c.l.b16 %v250
        %v327 = vunpack.c.l.b16 %v251
        %v328 = vunpack.c.l.b16 %v252
        %v329 = vunpack.c.l.b16 %v253
        %v330 = vunpack.c.l.b16 %v254
        %v331 = vunpack.c.l.b16 %v255
        %v332 = vpack.c.b16 %v301, %v300
        %v333 = vpack.c.b16 %v303, %v302
        %v334 = vpack.c.b16 %v305, %v304
        %v335 = vpack.c.b16 %v307, %v306
        %v336 = vpack.c.b16 %v309, %v308
        %v337 = vpack.c.b16 %v311, %v310
        %v338 = vpack.c.b16 %v313, %v312
        %v339 = vpack.c.b16 %v315, %v314
        %v340 = vpack.c.b16 %v317, %v316
        %v341 = vpack.c.b16 %v319, %v318
        %v342 = vpack.c.b16 %v321, %v320
        %v343 = vpack.c.b16 %v323, %v322
        %v344 = vpack.c.b16 %v325, %v324
        %v345 = vpack.c.b16 %v327, %v326
        %v346 = vpack.c.b16 %v329, %v328
        %v347 = vpack.c.b16 %v331, %v330
        %364 = vmatprep.subr.bf16.mxu0 0
        %365 = vmatpush1.bf16.msra.mxu0 %v339
        %366 = vmatprep.subr.bf16.mxu0 0
        %367 = vmatpush1.bf16.msra.mxu0 %v338
        %368 = vmatprep.subr.bf16.mxu0 0
        %369 = vmatpush1.bf16.msra.mxu0 %v337
        %370 = vmatprep.subr.bf16.mxu0 0
        %371 = vmatpush1.bf16.msra.mxu0 %v336
        %372 = vmatprep.subr.bf16.mxu0 0
        %373 = vmatpush1.bf16.msra.mxu0 %v335
        %374 = vmatprep.subr.bf16.mxu0 0
        %375 = vmatpush1.bf16.msra.mxu0 %v334
        %376 = vmatprep.subr.bf16.mxu0 0
        %377 = vmatpush1.bf16.msra.mxu0 %v333
        %378 = vmatprep.subr.bf16.mxu0 0
        %379 = vmatpush1.bf16.msra.mxu0 %v332
        %380 = vmatprep.subr.bf16.mxu0 0
        %381 = vmatpush2.bf16.msra.mxu0 %v347
        %382 = vmatprep.subr.bf16.mxu0 0
        %383 = vmatpush2.bf16.msra.mxu0 %v346
        %384 = vmatprep.subr.bf16.mxu0 0
        %385 = vmatpush2.bf16.msra.mxu0 %v345
        %386 = vmatprep.subr.bf16.mxu0 0
        %387 = vmatpush2.bf16.msra.mxu0 %v344
        %388 = vmatprep.subr.bf16.mxu0 0
        %389 = vmatpush2.bf16.msra.mxu0 %v343
        %390 = vmatprep.subr.bf16.mxu0 0
        %391 = vmatpush2.bf16.msra.mxu0 %v342
        %392 = vmatprep.subr.bf16.mxu0 0
        %393 = vmatpush2.bf16.msra.mxu0 %v341
        %394 = vmatprep.subr.bf16.mxu0 0
        %395 = vmatpush2.bf16.msra.mxu0 %v340
        %396 = vmatprep.mubr.bf16.mxu0 %v265
        %397 = vmatmul.mubr.bf16.gmra.mxu0 %v264
        %v398 = vpop.f32.mrf.mxu0
        %v399 = vadd.f32 %v256, %v398
        %v400 = vpop.f32.mrf.mxu0
        %v401 = vpop.f32.mrf.mxu0
        %v402 = vadd.f32 %v257, %v401
        %v403 = vpop.f32.mrf.mxu0
        %404 = vdwg.mxu0
        %405 = vst [vmem:[%s218] sm:$0xff] %v399
        %406 = vst [vmem:[%s218 + $0x8] sm:$0xff] %v402
        %s407 = sand.u32 %s97, 1
        %s408 = scalar_lea.sflag [#allocation4], %s407
        %s409 = sand.u32 %s97, 1
        %s410 = smul.addr %s409, 16
        %s411 = scalar_lea.vmem [#allocation8], %s410
        // Predicated region
        $region45: #{tpu_custom_call.1} parent=31 // pred_check
          %p412 = pneg %p107
        $region46: #{tpu_custom_call.1} parent=31 // pred_check_branch
          %414 = sbr.rel (%p412) target = $region48
        $region47: #{tpu_custom_call.1} parent=31 // pred_region
          %s415 = smul.u32 2, %s21
          %s417 = ssub.s32 256, 256
          %418 = vsyncadd %s408, %s417
          %s419 = smul.addr %s415, 128
          %s420 = scalar_lea.hbm %s3, %s419
          %s421 = sshll.u32 %s411, 4
          %s422 = int_to_ptr.vmem [resolvable:$true] %s421
          %427 = dma.vmem_to_hbm [thread:$0]  %s422, 256, %s420, %s408, 128, 128, 8
        $region48: #{tpu_custom_call.1} parent=31 // pred_fallthru
          _
      $region32: #{tpu_custom_call.1} parent=5 // pred_fallthru
        _
      %p428 = scmp.le.s32.totalorder 2, %s16
      // Predicated region
      $region49: #{tpu_custom_call.1} parent=5 // pred_check
        %p429 = pneg %p428
      $region50: #{tpu_custom_call.1} parent=5 // pred_check_branch
        %431 = sbr.rel (%p429) target = $region52
      $region51: #{tpu_custom_call.1} parent=5 // pred_region
        %s432 = ssub.s32 %s16, 2
        // Predicated region
        $region53: #{tpu_custom_call.1} parent=51 // pred_check
          %p433 = pneg %p113
        $region54: #{tpu_custom_call.1} parent=51 // pred_check_branch
          %435 = sbr.rel (%p433) target = $region56
        $region55: #{tpu_custom_call.1} parent=51 // pred_region
          %s436 = sand.u32 %s98, 1
          %s437 = scalar_lea.sflag [#allocation4], %s436
          %s438 = sand.u32 %s98, 1
          %s439 = smul.addr %s438, 16
          %s440 = scalar_lea.vmem [#allocation8], %s439
          %441 = dma.done %s437, 256
        $region56: #{tpu_custom_call.1} parent=51 // pred_fallthru
          _
      $region52: #{tpu_custom_call.1} parent=5 // pred_fallthru
        _
    $region6: #{tpu_custom_call.1} parent=1 // loop_footer
      %s20 = sadd.s32 1, %s16
    $region7: #{tpu_custom_call.1} parent=1 // loop_footer_branch
      %15 = sbr.rel target = $region3
    $region8: #{tpu_custom_call.1} parent=1 // loop_exit
      _
    %442 = vsyncpa [#allocation3], 1
    %s443 = scalar_lea.sflag [#allocation3], 1
    %444 = vsyncpa %s443, 1
    %445 = vsyncpa [#allocation6], 1
    %446 = vsyncpa [#allocation4], 1
    %s447 = scalar_lea.sflag [#allocation4], 1
    %448 = vsyncpa %s447, 1

// kernel: tpu_custom_call.1
$region0: #{tpu_custom_call.1}
  #allocation0 [shape = 'u32[]', space=smem, size = 0x4, offset = 0x4, fixed_abs, tag = 'smem constant byte address 0x4 - core index']
  #allocation1 [shape = 'u32[144,128]{1,0:T(1,128)}', space=vmem, size = 0x12000, scoped, tag = 'internal scratch']
  %s0 = inlined_call_operand.hbm [shape: bf16[32,256], index: 0, kind: input, shape index: {}]
  %s1 = inlined_call_operand.hbm [shape: bf16[256,128], index: 1, kind: input, shape index: {}]
  %s2 = inlined_call_operand.hbm [shape: f32[16,128], index: 2, kind: input, shape index: {}]
  %s3 = inlined_call_operand.hbm [shape: f32[32,128], index: 3, kind: output, shape index: {}]
  %s4 = sld [smem:[#allocation0]]
  $region57: #{tpu_custom_call.1} parent=0
    _
  %s6 = ssub.s32 1, %s4
  %s7 = scalar_select 0, %s6, %s4
  $region1: #{tpu_custom_call.1} parent=0
    #allocation2 [shape = 'u8[16384]{0}', space=vmem, size = 0x4000, scoped, tag = 'input window, operand 0']
    #allocation3 [shape = 's32[2]{0}', space=sflag, size = 0x8, scoped, tag = 'scoped memory for tpu_custom_call.1']
    #allocation4 [shape = 's32[2]{0}', space=sflag, size = 0x8, scoped, tag = 'scoped memory for tpu_custom_call.1']
    #allocation5 [shape = 'u8[65536]{0}', space=vmem, size = 0x10000, scoped, tag = 'input window, operand 1, single buffered']
    #allocation6 [shape = 's32[1]{0}', space=sflag, size = 0x4, scoped, tag = 'scoped memory for tpu_custom_call.1']
    #allocation7 [shape = 'u8[8192]{0}', space=vmem, size = 0x2000, scoped, tag = 'input window, operand 2, single buffered']
    #allocation8 [shape = 'u8[16384]{0}', space=vmem, size = 0x4000, scoped, tag = 'output window, operand 0']
    %8 = vsyncpa [#allocation3], 0
    %s9 = scalar_lea.sflag [#allocation3], 1
    %10 = vsyncpa %s9, 0
    %11 = vsyncpa [#allocation6], 0
    %12 = vsyncpa [#allocation4], 0
    %s13 = scalar_lea.sflag [#allocation4], 1
    %14 = vsyncpa %s13, 0
    loop: start=0, step=1, limit=4
    $region2: #{tpu_custom_call.1} parent=1 // loop_pre_header
      _
    $region3: #{tpu_custom_call.1} parent=1 // loop_header
      %s16 = sphi 0, %s20
      %p17 = scmp.ge.s32.totalorder %s16, 4
      %s26 = sphi 0, %s28
      %s29 = sphi 0, %s26
      %s30 = sphi 0, %s29
      %s46 = sphi 0, %s30
      %s50 = sphi 0, %s50
      %s52 = sphi 0, %s50
      %s53 = sphi 0, %s52
      %s67 = sphi 0, %s53
      %s71 = sphi 0, %s71
      %s73 = sphi 0, %s71
      %s74 = sphi 0, %s73
      %s88 = sphi 0, %s74
      %s94 = sphi 0, %s96
      %s97 = sphi 0, %s94
      %s98 = sphi 0, %s97
      %s114 = sphi 0, %s98
    $region4: #{tpu_custom_call.1} parent=1 // loop_header_branch
      %19 = sbr.rel (%p17) target = $region8
    $region5: #{tpu_custom_call.1} parent=1 // loop_body
      %s21 = ssub.s32 %s16, 1
      %s22 = ssub.s32 %s16, 2
      %s23 = sadd.s32 %s16, 1
      %s24 = ssub.s32 %s16, %s23
      %p25 = scmp.eq.s32.totalorder %s24, 0
      %s27 = sadd.s32 %s26, 1
      %s28 = scalar_select %p25, %s26, %s27
      %p31 = pneg %p25
      %p32 = scmp.eq.s32.totalorder %s16, 1
      %p33 = por %p31, %p32
      %p34 = scmp.ne.s32.totalorder %s26, %s29
      %p35 = scmp.eq.s32.totalorder %s16, 0
      %p36 = por %p34, %p35
      %p37 = scmp.ne.s32.totalorder %s26, %s29
      %p38 = scmp.eq.s32.totalorder %s21, 1
      %p39 = por %p37, %p38
      %p40 = scmp.ne.s32.totalorder %s29, %s30
      %p41 = scmp.eq.s32.totalorder %s21, 0
      %p42 = por %p40, %p41
      %p43 = scmp.ne.s32.totalorder %s29, %s30
      %p44 = scmp.eq.s32.totalorder %s22, 1
      %p45 = por %p43, %p44
      %p47 = scmp.ne.s32.totalorder %s30, %s46
      %p48 = scmp.eq.s32.totalorder %s22, 0
      %p49 = por %p47, %p48
      %s51 = sadd.s32 %s50, 1
      %p54 = scmp.eq.s32.totalorder %s16, 1
      %p55 = scmp.ne.s32.totalorder %s50, %s52
      %p56 = scmp.eq.s32.totalorder %s16, 0
      %p57 = por %p55, %p56
      %p58 = scmp.ne.s32.totalorder %s50, %s52
      %p59 = scmp.eq.s32.totalorder %s21, 1
      %p60 = por %p58, %p59
      %p61 = scmp.ne.s32.totalorder %s52, %s53
      %p62 = scmp.eq.s32.totalorder %s21, 0
      %p63 = por %p61, %p62
      %p64 = scmp.ne.s32.totalorder %s52, %s53
      %p65 = scmp.eq.s32.totalorder %s22, 1
      %p66 = por %p64, %p65
      %p68 = scmp.ne.s32.totalorder %s53, %s67
      %p69 = scmp.eq.s32.totalorder %s22, 0
      %p70 = por %p68, %p69
      %s72 = sadd.s32 %s71, 1
      %p75 = scmp.eq.s32.totalorder %s16, 1
      %p76 = scmp.ne.s32.totalorder %s71, %s73
      %p77 = scmp.eq.s32.totalorder %s16, 0
      %p78 = por %p76, %p77
      %p79 = scmp.ne.s32.totalorder %s71, %s73
      %p80 = scmp.eq.s32.totalorder %s21, 1
      %p81 = por %p79, %p80
      %p82 = scmp.ne.s32.totalorder %s73, %s74
      %p83 = scmp.eq.s32.totalorder %s21, 0
      %p84 = por %p82, %p83
      %p85 = scmp.ne.s32.totalorder %s73, %s74
      %p86 = scmp.eq.s32.totalorder %s22, 1
      %p87 = por %p85, %p86
      %p89 = scmp.ne.s32.totalorder %s74, %s88
      %p90 = scmp.eq.s32.totalorder %s22, 0
      %p91 = por %p89, %p90
      %s92 = ssub.s32 %s16, %s23
      %p93 = scmp.eq.s32.totalorder %s92, 0
      %s95 = sadd.s32 %s94, 1
      %s96 = scalar_select %p93, %s94, %s95
      %p99 = pneg %p93
      %p100 = scmp.eq.s32.totalorder %s16, 1
      %p101 = por %p99, %p100
      %p102 = scmp.ne.s32.totalorder %s94, %s97
      %p103 = scmp.eq.s32.totalorder %s16, 0
      %p104 = por %p102, %p103
      %p105 = scmp.ne.s32.totalorder %s94, %s97
      %p106 = scmp.eq.s32.totalorder %s21, 1
      %p107 = por %p105, %p106
      %p108 = scmp.ne.s32.totalorder %s97, %s98
      %p109 = scmp.eq.s32.totalorder %s21, 0
      %p110 = por %p108, %p109
      %p111 = scmp.ne.s32.totalorder %s97, %s98
      %p112 = scmp.eq.s32.totalorder %s22, 1
      %p113 = por %p111, %p112
      %p115 = scmp.ne.s32.totalorder %s98, %s114
      %p116 = scmp.eq.s32.totalorder %s22, 0
      %p117 = por %p115, %p116
      %p118 = scmp.le.s32.totalorder 1, %s16
      %p119 = scmp.lt.s32.totalorder %s16, 3
      %p120 = pnand %p118, %p119
      %p121 = pneg %p120
      // Predicated region
      $region9: #{tpu_custom_call.1} parent=5 // pred_check
        _
      $region10: #{tpu_custom_call.1} parent=5 // pred_check_branch
        %123 = sbr.rel (%p120) target = $region12
      $region11: #{tpu_custom_call.1} parent=5 // pred_region
        %s124 = ssub.s32 %s16, 1
        // Predicated region
        $region13: #{tpu_custom_call.1} parent=11 // pred_check
          %p125 = pneg %p63
        $region14: #{tpu_custom_call.1} parent=11 // pred_check_branch
          %127 = sbr.rel (%p125) target = $region16
        $region15: #{tpu_custom_call.1} parent=11 // pred_region
          %s129 = ssub.s32 2048, 2048
          %130 = vsyncadd [#allocation6], %s129
          %s131 = sshll.u32 [#allocation5], 4
          %s132 = int_to_ptr.vmem [resolvable:$true] %s131
          %137 = dma.hbm_to_vmem [thread:$0]  %s1, 2048, %s132, [#allocation6], 64, 64, 4
        $region16: #{tpu_custom_call.1} parent=11 // pred_fallthru
          _
        // Predicated region
        $region17: #{tpu_custom_call.1} parent=11 // pred_check
          %p138 = pneg %p84
        $region18: #{tpu_custom_call.1} parent=11 // pred_check_branch
          %140 = sbr.rel (%p138) target = $region20
        $region19: #{tpu_custom_call.1} parent=11 // pred_region
          %s142 = ssub.s32 256, 256
          %143 = vsyncadd [#allocation6], %s142
          %s144 = sshll.u32 [#allocation7], 4
          %s145 = int_to_ptr.vmem [resolvable:$true] %s144
          %150 = dma.hbm_to_vmem [thread:$0]  %s2, 256, %s145, [#allocation6], 128, 128, 8
        $region20: #{tpu_custom_call.1} parent=11 // pred_fallthru
          _
      $region12: #{tpu_custom_call.1} parent=5 // pred_fallthru
        _
      %p151 = scmp.lt.s32.totalorder %s16, 2
      // Predicated region
      $region21: #{tpu_custom_call.1} parent=5 // pred_check
        %p152 = pneg %p151
      $region22: #{tpu_custom_call.1} parent=5 // pred_check_branch
        %154 = sbr.rel (%p152) target = $region24
      $region23: #{tpu_custom_call.1} parent=5 // pred_region
        // Predicated region
        $region25: #{tpu_custom_call.1} parent=23 // pred_check
          %p155 = pneg %p36
        $region26: #{tpu_custom_call.1} parent=23 // pred_check_branch
          %157 = sbr.rel (%p155) target = $region28
        $region27: #{tpu_custom_call.1} parent=23 // pred_region
          %s158 = sand.u32 %s26, 1
          %s159 = scalar_lea.sflag [#allocation3], %s158
          %s160 = sand.u32 %s26, 1
          %s161 = smul.addr %s160, 16
          %s162 = scalar_lea.vmem [#allocation2], %s161
          %s163 = smul.u32 2, %s16
          %s165 = ssub.s32 256, 256
          %166 = vsyncadd %s159, %s165
          %s167 = smul.addr %s163, 2
          %s168 = smul.addr %s167, 64
          %s169 = scalar_lea.hbm %s0, %s168
          %s170 = sshll.u32 %s162, 4
          %s171 = int_to_ptr.vmem [resolvable:$true] %s170
          %176 = dma.hbm_to_vmem [thread:$0]  %s169, 256, %s171, %s159, 128, 128, 8
        $region28: #{tpu_custom_call.1} parent=23 // pred_fallthru
          _
      $region24: #{tpu_custom_call.1} parent=5 // pred_fallthru
        _
      %p177 = scmp.le.s32.totalorder 1, %s16
      %p178 = scmp.lt.s32.totalorder %s16, 3
      %p179 = pnand %p177, %p178
      %p180 = pneg %p179
      // Predicated region
      $region29: #{tpu_custom_call.1} parent=5 // pred_check
        _
      $region30: #{tpu_custom_call.1} parent=5 // pred_check_branch
        %182 = sbr.rel (%p179) target = $region32
      $region31: #{tpu_custom_call.1} parent=5 // pred_region
        %s183 = ssub.s32 %s16, 1
        %s184 = sand.u32 %s29, 1
        %s185 = scalar_lea.sflag [#allocation3], %s184
        %s186 = sand.u32 %s29, 1
        %s187 = smul.addr %s186, 16
        %s188 = scalar_lea.vmem [#allocation2], %s187
        // Predicated region
        $region33: #{tpu_custom_call.1} parent=31 // pred_check
          %p189 = pneg %p42
        $region34: #{tpu_custom_call.1} parent=31 // pred_check_branch
          %191 = sbr.rel (%p189) target = $region36
        $region35: #{tpu_custom_call.1} parent=31 // pred_region
          %192 = dma.done %s185, 256
        $region36: #{tpu_custom_call.1} parent=31 // pred_fallthru
          _
        // Predicated region
        $region37: #{tpu_custom_call.1} parent=31 // pred_check
          %p193 = pneg %p63
        $region38: #{tpu_custom_call.1} parent=31 // pred_check_branch
          %195 = sbr.rel (%p193) target = $region40
        $region39: #{tpu_custom_call.1} parent=31 // pred_region
          %196 = dma.done [#allocation6], 2048
        $region40: #{tpu_custom_call.1} parent=31 // pred_fallthru
          _
        // Predicated region
        $region41: #{tpu_custom_call.1} parent=31 // pred_check
          %p197 = pneg %p84
        $region42: #{tpu_custom_call.1} parent=31 // pred_check_branch
          %199 = sbr.rel (%p197) target = $region44
        $region43: #{tpu_custom_call.1} parent=31 // pred_region
          %200 = dma.done [#allocation6], 256
        $region44: #{tpu_custom_call.1} parent=31 // pred_fallthru
          _
        %s201 = sand.u32 %s29, 1
        %s202 = scalar_lea.sflag [#allocation3], %s201
        %s203 = sand.u32 %s29, 1
        %s204 = smul.addr %s203, 16
        %s205 = scalar_lea.vmem [#allocation2], %s204
        %p206 = pneg %p42
        %p207 = pneg %p39
        %p208 = pneg %p63
        %p209 = pneg %p60
        %p210 = pneg %p84
        %p211 = pneg %p81
        %p212 = pneg %p110
        %p213 = pneg %p107
        %s214 = sand.u32 %s97, 1
        %s215 = scalar_lea.sflag [#allocation4], %s214
        %s216 = sand.u32 %s97, 1
        %s217 = smul.addr %s216, 16
        %s218 = scalar_lea.vmem [#allocation8], %s217
        %s219 = smul.u32 2, %s21
        %s220 = smul.u32 2, %s21
        %v222 = vld [vmem:[%s188] sm:$0xff]
        %v223 = vld [vmem:[%s188 + $0x8] sm:$0xff]
        %v224 = vld [vmem:[#allocation5] sm:$0xf]
        %v225 = vld [vmem:[#allocation5 + $0x4] sm:$0xf]
        %v226 = vld [vmem:[#allocation5 + $0x8] sm:$0xf]
        %v227 = vld [vmem:[#allocation5 + $0xc] sm:$0xf]
        %v228 = vld [vmem:[#allocation5 + $0x10] sm:$0xf]
        %v229 = vld [vmem:[#allocation5 + $0x14] sm:$0xf]
        %v230 = vld [vmem:[#allocation5 + $0x18] sm:$0xf]
        %v231 = vld [vmem:[#allocation5 + $0x1c] sm:$0xf]
        %v232 = vld [vmem:[#allocation5 + $0x20] sm:$0xf]
        %v233 = vld [vmem:[#allocation5 + $0x24] sm:$0xf]
        %v234 = vld [vmem:[#allocation5 + $0x28] sm:$0xf]
        %v235 = vld [vmem:[#allocation5 + $0x2c] sm:$0xf]
        %v236 = vld [vmem:[#allocation5 + $0x30] sm:$0xf]
        %v237 = vld [vmem:[#allocation5 + $0x34] sm:$0xf]
        %v238 = vld [vmem:[#allocation5 + $0x38] sm:$0xf]
        %v239 = vld [vmem:[#allocation5 + $0x3c] sm:$0xf]
        %v240 = vld [vmem:[#allocation5 + $0x40] sm:$0xf]
        %v241 = vld [vmem:[#allocation5 + $0x44] sm:$0xf]
        %v242 = vld [vmem:[#allocation5 + $0x48] sm:$0xf]
        %v243 = vld [vmem:[#allocation5 + $0x4c] sm:$0xf]
        %v244 = vld [vmem:[#allocation5 + $0x50] sm:$0xf]
        %v245 = vld [vmem:[#allocation5 + $0x54] sm:$0xf]
        %v246 = vld [vmem:[#allocation5 + $0x58] sm:$0xf]
        %v247 = vld [vmem:[#allocation5 + $0x5c] sm:$0xf]
        %v248 = vld [vmem:[#allocation5 + $0x60] sm:$0xf]
        %v249 = vld [vmem:[#allocation5 + $0x64] sm:$0xf]
        %v250 = vld [vmem:[#allocation5 + $0x68] sm:$0xf]
        %v251 = vld [vmem:[#allocation5 + $0x6c] sm:$0xf]
        %v252 = vld [vmem:[#allocation5 + $0x70] sm:$0xf]
        %v253 = vld [vmem:[#allocation5 + $0x74] sm:$0xf]
        %v254 = vld [vmem:[#allocation5 + $0x78] sm:$0xf]
        %v255 = vld [vmem:[#allocation5 + $0x7c] sm:$0xf]
        %v256 = vld [vmem:[#allocation7] sm:$0xff]
        %v257 = vld [vmem:[#allocation7 + $0x8] sm:$0xff]
        %v260 = vunpack.c.l.b16 %v222
        %v261 = vunpack.c.h.b16 %v222
        %v262 = vunpack.c.l.b16 %v223
        %v263 = vunpack.c.h.b16 %v223
        %v264 = vpack.c.b16 %v262, %v260
        %v265 = vpack.c.b16 %v263, %v261
        %v300 = vunpack.c.l.b16 %v224
        %v301 = vunpack.c.l.b16 %v225
        %v302 = vunpack.c.l.b16 %v226
        %v303 = vunpack.c.l.b16 %v227
        %v304 = vunpack.c.l.b16 %v228
        %v305 = vunpack.c.l.b16 %v229
        %v306 = vunpack.c.l.b16 %v230
        %v307 = vunpack.c.l.b16 %v231
        %v308 = vunpack.c.l.b16 %v232
        %v309 = vunpack.c.l.b16 %v233
        %v310 = vunpack.c.l.b16 %v234
        %v311 = vunpack.c.l.b16 %v235
        %v312 = vunpack.c.l.b16 %v236
        %v313 = vunpack.c.l.b16 %v237
        %v314 = vunpack.c.l.b16 %v238
        %v315 = vunpack.c.l.b16 %v239
        %v316 = vunpack.c.l.b16 %v240
        %v317 = vunpack.c.l.b16 %v241
        %v318 = vunpack.c.l.b16 %v242
        %v319 = vunpack.c.l.b16 %v243
        %v320 = vunpack.c.l.b16 %v244
        %v321 = vunpack.c.l.b16 %v245
        %v322 = vunpack.c.l.b16 %v246
        %v323 = vunpack.c.l.b16 %v247
        %v324 = vunpack.c.l.b16 %v248
        %v325 = vunpack.c.l.b16 %v249
        %v326 = vunpack.c.l.b16 %v250
        %v327 = vunpack.c.l.b16 %v251
        %v328 = vunpack.c.l.b16 %v252
        %v329 = vunpack.c.l.b16 %v253
        %v330 = vunpack.c.l.b16 %v254
        %v331 = vunpack.c.l.b16 %v255
        %v332 = vpack.c.b16 %v301, %v300
        %v333 = vpack.c.b16 %v303, %v302
        %v334 = vpack.c.b16 %v305, %v304
        %v335 = vpack.c.b16 %v307, %v306
        %v336 = vpack.c.b16 %v309, %v308
        %v337 = vpack.c.b16 %v311, %v310
        %v338 = vpack.c.b16 %v313, %v312
        %v339 = vpack.c.b16 %v315, %v314
        %v340 = vpack.c.b16 %v317, %v316
        %v341 = vpack.c.b16 %v319, %v318
        %v342 = vpack.c.b16 %v321, %v320
        %v343 = vpack.c.b16 %v323, %v322
        %v344 = vpack.c.b16 %v325, %v324
        %v345 = vpack.c.b16 %v327, %v326
        %v346 = vpack.c.b16 %v329, %v328
        %v347 = vpack.c.b16 %v331, %v330
        %364 = vmatprep.subr.bf16.mxu0 0
        %365 = vmatpush1.bf16.msra.mxu0 %v339
        %366 = vmatprep.subr.bf16.mxu0 0
        %367 = vmatpush1.bf16.msra.mxu0 %v338
        %368 = vmatprep.subr.bf16.mxu0 0
        %369 = vmatpush1.bf16.msra.mxu0 %v337
        %370 = vmatprep.subr.bf16.mxu0 0
        %371 = vmatpush1.bf16.msra.mxu0 %v336
        %372 = vmatprep.subr.bf16.mxu0 0
        %373 = vmatpush1.bf16.msra.mxu0 %v335
        %374 = vmatprep.subr.bf16.mxu0 0
        %375 = vmatpush1.bf16.msra.mxu0 %v334
        %376 = vmatprep.subr.bf16.mxu0 0
        %377 = vmatpush1.bf16.msra.mxu0 %v333
        %378 = vmatprep.subr.bf16.mxu0 0
        %379 = vmatpush1.bf16.msra.mxu0 %v332
        %380 = vmatprep.subr.bf16.mxu0 0
        %381 = vmatpush2.bf16.msra.mxu0 %v347
        %382 = vmatprep.subr.bf16.mxu0 0
        %383 = vmatpush2.bf16.msra.mxu0 %v346
        %384 = vmatprep.subr.bf16.mxu0 0
        %385 = vmatpush2.bf16.msra.mxu0 %v345
        %386 = vmatprep.subr.bf16.mxu0 0
        %387 = vmatpush2.bf16.msra.mxu0 %v344
        %388 = vmatprep.subr.bf16.mxu0 0
        %389 = vmatpush2.bf16.msra.mxu0 %v343
        %390 = vmatprep.subr.bf16.mxu0 0
        %391 = vmatpush2.bf16.msra.mxu0 %v342
        %392 = vmatprep.subr.bf16.mxu0 0
        %393 = vmatpush2.bf16.msra.mxu0 %v341
        %394 = vmatprep.subr.bf16.mxu0 0
        %395 = vmatpush2.bf16.msra.mxu0 %v340
        %396 = vmatprep.mubr.bf16.mxu0 %v265
        %397 = vmatmul.mubr.bf16.gmra.mxu0 %v264
        %v398 = vpop.f32.mrf.mxu0
        %v399 = vadd.f32 %v256, %v398
        %v400 = vpop.f32.mrf.mxu0
        %v401 = vpop.f32.mrf.mxu0
        %v402 = vadd.f32 %v257, %v401
        %v403 = vpop.f32.mrf.mxu0
        %404 = vdwg.mxu0
        %405 = vst [vmem:[%s218] sm:$0xff] %v399
        %406 = vst [vmem:[%s218 + $0x8] sm:$0xff] %v402
        %s407 = sand.u32 %s97, 1
        %s408 = scalar_lea.sflag [#allocation4], %s407
        %s409 = sand.u32 %s97, 1
        %s410 = smul.addr %s409, 16
        %s411 = scalar_lea.vmem [#allocation8], %s410
        // Predicated region
        $region45: #{tpu_custom_call.1} parent=31 // pred_check
          %p412 = pneg %p107
        $region46: #{tpu_custom_call.1} parent=31 // pred_check_branch
          %414 = sbr.rel (%p412) target = $region48
        $region47: #{tpu_custom_call.1} parent=31 // pred_region
          %s415 = smul.u32 2, %s21
          %s417 = ssub.s32 256, 256
          %418 = vsyncadd %s408, %s417
          %s419 = smul.addr %s415, 128
          %s420 = scalar_lea.hbm %s3, %s419
          %s421 = sshll.u32 %s411, 4
          %s422 = int_to_ptr.vmem [resolvable:$true] %s421
          %427 = dma.vmem_to_hbm [thread:$0]  %s422, 256, %s420, %s408, 128, 128, 8
        $region48: #{tpu_custom_call.1} parent=31 // pred_fallthru
          _
      $region32: #{tpu_custom_call.1} parent=5 // pred_fallthru
        _
      %p428 = scmp.le.s32.totalorder 2, %s16
      // Predicated region
      $region49: #{tpu_custom_call.1} parent=5 // pred_check
        %p429 = pneg %p428
      $region50: #{tpu_custom_call.1} parent=5 // pred_check_branch
        %431 = sbr.rel (%p429) target = $region52
      $region51: #{tpu_custom_call.1} parent=5 // pred_region
        %s432 = ssub.s32 %s16, 2
        // Predicated region
        $region53: #{tpu_custom_call.1} parent=51 // pred_check
          %p433 = pneg %p113
        $region54: #{tpu_custom_call.1} parent=51 // pred_check_branch
          %435 = sbr.rel (%p433) target = $region56
        $region55: #{tpu_custom_call.1} parent=51 // pred_region
          %s436 = sand.u32 %s98, 1
          %s437 = scalar_lea.sflag [#allocation4], %s436
          %s438 = sand.u32 %s98, 1
          %s439 = smul.addr %s438, 16
          %s440 = scalar_lea.vmem [#allocation8], %s439
          %441 = dma.done %s437, 256
        $region56: #{tpu_custom_call.1} parent=51 // pred_fallthru
          _
      $region52: #{tpu_custom_call.1} parent=5 // pred_fallthru
        _
    $region6: #{tpu_custom_call.1} parent=1 // loop_footer
      %s20 = sadd.s32 1, %s16
    $region7: #{tpu_custom_call.1} parent=1 // loop_footer_branch
      %15 = sbr.rel target = $region3
    $region8: #{tpu_custom_call.1} parent=1 // loop_exit
      _
    %442 = vsyncpa [#allocation3], 1
    %s443 = scalar_lea.sflag [#allocation3], 1
    %444 = vsyncpa %s443, 1
    %445 = vsyncpa [#allocation6], 1
    %446 = vsyncpa [#allocation4], 1
    %s447 = scalar_lea.sflag [#allocation4], 1
    %448 = vsyncpa %s447, 1

</llo_original>
